<compile_context>
chip_gen: v7x
topology: tpu7x:2x2x1
jax: 0.10.0
libtpu: 0.0.40
codegen_flags: <defaults>
</compile_context>

<pallas_src>
import jax
import jax.numpy as jnp
from jax.experimental import pallas as pl
from jax.experimental.pallas import tpu as pltpu


def mlp_kernel(x_ref, w1_ref, b1_ref, w2_ref, b2_ref, w3_ref, b3_ref, o_ref):
    # fc1 + ReLU  (bf16 operands stream from HBM, f32 MXU accumulation; bias/ReLU
    # stay fused in f32 on the VPU)
    h1 = jnp.dot(x_ref[...], w1_ref[...], preferred_element_type=jnp.float32)
    h1 = jnp.maximum(h1 + b1_ref[...], 0.0)
    # fc2 + ReLU
    h2 = jnp.dot(h1.astype(jnp.bfloat16), w2_ref[...],
                 preferred_element_type=jnp.float32)
    h2 = jnp.maximum(h2 + b2_ref[...], 0.0)
    # fc3 (logits, no activation): weight padded to 128 lanes for a lane-dense
    # in-VMEM result; only the real logit lanes are written back to HBM.
    out = jnp.dot(h2.astype(jnp.bfloat16), w3_ref[...],
                  preferred_element_type=jnp.float32) + b3_ref[...]
    o_ref[...] = out[:, : o_ref.shape[-1]].astype(o_ref.dtype)


def _round_up(n: int, m: int) -> int:
    return ((n + m - 1) // m) * m


def _cdiv(a: int, b: int) -> int:
    return -(-a // b)


def currency_classifier_forward(x, params, tb: int = 1024):
    """x: (B, input_size) float32. params: dict of w1,b1,w2,b2,w3,b3 (weights (in,out))."""
    B, F = x.shape
    n_out = params["w3"].shape[1]          # = 2

    # ---- batch tiling: big tiles, minimal padding, megacore-aware split ----
    B16 = _round_up(B, 16)                 # bf16 sublane packing = 16 rows
    n_tiles = max(1, _cdiv(B16, tb))
    if B16 >= 32:
        n_tiles = max(n_tiles, 2)          # let v7x's 2 TensorCores both work
    TB = _round_up(_cdiv(B16, n_tiles), 16)
    Bp = n_tiles * TB

    # x: pad minimally and cast to bf16 *before* the pallas_call (2 B/elem DMA).
    xb = jnp.pad(x, ((0, Bp - B), (0, 0))).astype(jnp.bfloat16)

    # Weights cast to bf16 once (MXU-native); biases kept f32.
    w1 = params["w1"].astype(jnp.bfloat16)
    w2 = params["w2"].astype(jnp.bfloat16)
    b1 = params["b1"].astype(jnp.float32)
    b2 = params["b2"].astype(jnp.float32)
    # fc3 padded to 128 output lanes (zeros) inside the kernel only; HBM output stays
    # narrow (n_out lanes).
    OUT_PAD = 128
    w3 = jnp.pad(params["w3"], ((0, 0), (0, OUT_PAD - n_out))).astype(jnp.bfloat16)
    b3 = jnp.pad(params["b3"], ((0, 0), (0, OUT_PAD - n_out))).astype(jnp.float32)

    # Weights/biases use constant index_maps -> VMEM-resident, DMA'd once.
    resident = lambda a: pl.BlockSpec(a.shape, lambda i: (0,) * a.ndim)

    flops = 2 * Bp * (F * 128 + 128 * 64 + 64 * n_out)
    bytes_accessed = (
        xb.size * 2                               # bf16 input stream
        + Bp * n_out * 4                          # narrow f32 logit writeback
        + (w1.size + w2.size + w3.size) * 2       # bf16 weights (once)
        + (b1.size + b2.size + b3.size) * 4       # f32 biases (once)
    )

    out = pl.pallas_call(
        mlp_kernel,
        out_shape=jax.ShapeDtypeStruct((Bp, n_out), jnp.float32),
        grid=(n_tiles,),
        in_specs=[
            pl.BlockSpec((TB, F), lambda i: (i, 0)),   # x: streamed per batch tile
            resident(w1), resident(b1),                # weights/biases: resident
            resident(w2), resident(b2),
            resident(w3), resident(b3),
        ],
        out_specs=pl.BlockSpec((TB, n_out), lambda i: (i, 0)),
        compiler_params=pltpu.CompilerParams(
            dimension_semantics=("parallel",),
        ),
        cost_estimate=pl.CostEstimate(
            flops=flops, transcendentals=0, bytes_accessed=bytes_accessed),
    )(xb, w1, b1, w2, b2, w3, b3)

    return out[:B]


def init_params(key, input_size):
    """Deterministic init matching nn.Linear shapes (weights stored as (in, out))."""
    ks = jax.random.split(key, 6)

    def uinit(k, fan_in, shape):
        bound = 1.0 / jnp.sqrt(fan_in)
        return jax.random.uniform(k, shape, jnp.float32, -bound, bound)

    return {
        "w1": uinit(ks[0], input_size, (input_size, 128)),
        "b1": uinit(ks[1], input_size, (1, 128)),
        "w2": uinit(ks[2], 128, (128, 64)),
        "b2": uinit(ks[3], 128, (1, 64)),
        "w3": uinit(ks[4], 64, (64, 2)),
        "b3": uinit(ks[5], 64, (1, 2)),
    }


def reference_forward(x, p):
    h1 = jnp.maximum(x @ p["w1"] + p["b1"], 0.0)
    h2 = jnp.maximum(h1 @ p["w2"] + p["b2"], 0.0)
    return h2 @ p["w3"] + p["b3"]


if __name__ == "__main__":
    key = jax.random.PRNGKey(0)
    input_size = 32
    batch = 8
    k_x, k_p = jax.random.split(key)
    x = jax.random.normal(k_x, (batch, input_size), jnp.float32)
    params = init_params(k_p, input_size)

    out = currency_classifier_forward(x, params)
    out = jax.block_until_ready(out)

    ref = reference_forward(x, params)
    assert out.shape == (batch, 2), out.shape
    # bf16 matmul operands (f32 accumulation) -> relaxed tolerance vs. the f32 reference.
    assert jnp.allclose(out, ref, atol=5e-2, rtol=2e-2), (out, ref)
    print("KERNEL_OK")
</pallas_src>

<mosaic_0001>
module attributes {stable_mosaic.version = 11 : i64} {
  func.func @mlp_kernel(%arg0: i32, %arg1: memref<16x32xbf16, #tpu.memory_space<vmem>>, %arg2: memref<32x128xbf16, #tpu.memory_space<vmem>>, %arg3: memref<1x128xf32, #tpu.memory_space<vmem>>, %arg4: memref<128x64xbf16, #tpu.memory_space<vmem>>, %arg5: memref<1x64xf32, #tpu.memory_space<vmem>>, %arg6: memref<64x128xbf16, #tpu.memory_space<vmem>>, %arg7: memref<1x128xf32, #tpu.memory_space<vmem>>, %arg8: memref<16x2xf32, #tpu.memory_space<vmem>>) attributes {dimension_semantics = [#tpu.dimension_semantics<parallel>], iteration_bounds = array<i64: 1>, scalar_prefetch = 0 : i64, scratch_operands = 0 : i64, tpu.core_type = #tpu.core_type<tc>, window_params = [{transform_indices = @transform_0, window_bounds = array<i64: 16, 32>}, {pipeline_mode = #tpu.pipeline_mode<synchronous>, transform_indices = @transform_1, window_bounds = array<i64: 32, 128>}, {pipeline_mode = #tpu.pipeline_mode<synchronous>, transform_indices = @transform_2, window_bounds = array<i64: 1, 128>}, {pipeline_mode = #tpu.pipeline_mode<synchronous>, transform_indices = @transform_3, window_bounds = array<i64: 128, 64>}, {pipeline_mode = #tpu.pipeline_mode<synchronous>, transform_indices = @transform_4, window_bounds = array<i64: 1, 64>}, {pipeline_mode = #tpu.pipeline_mode<synchronous>, transform_indices = @transform_5, window_bounds = array<i64: 64, 128>}, {pipeline_mode = #tpu.pipeline_mode<synchronous>, transform_indices = @transform_6, window_bounds = array<i64: 1, 128>}, {transform_indices = @transform_7, window_bounds = array<i64: 16, 2>}]} {
    %c0 = arith.constant 0 : index
    %c0_0 = arith.constant 0 : index
    %0 = vector.load %arg1[%c0, %c0_0] : memref<16x32xbf16, #tpu.memory_space<vmem>>, vector<16x32xbf16>
    %c0_1 = arith.constant 0 : index
    %c0_2 = arith.constant 0 : index
    %1 = vector.load %arg2[%c0_1, %c0_2] : memref<32x128xbf16, #tpu.memory_space<vmem>>, vector<32x128xbf16>
    %cst = arith.constant dense<0.000000e+00> : vector<16x128xf32>
    %2 = tpu.matmul %0, %1, %cst {dimension_numbers = #tpu.dot_dimension_numbers<[1], [0], [0], [1], [0, 0, 1, 1], [], []>} : vector<16x32xbf16>, vector<32x128xbf16>, vector<16x128xf32> -> vector<16x128xf32>
    %c0_3 = arith.constant 0 : index
    %c0_4 = arith.constant 0 : index
    %3 = vector.load %arg3[%c0_3, %c0_4] : memref<1x128xf32, #tpu.memory_space<vmem>>, vector<1x128xf32>
    %4 = vector.broadcast %3 : vector<1x128xf32> to vector<16x128xf32>
    %5 = arith.addf %2, %4 : vector<16x128xf32>
    %cst_5 = arith.constant 0.000000e+00 : f32
    %6 = vector.broadcast %cst_5 : f32 to vector<16x128xf32>
    %7 = arith.maximumf %5, %6 : vector<16x128xf32>
    %8 = arith.truncf %7 : vector<16x128xf32> to vector<16x128xbf16>
    %c0_6 = arith.constant 0 : index
    %c0_7 = arith.constant 0 : index
    %9 = vector.load %arg4[%c0_6, %c0_7] : memref<128x64xbf16, #tpu.memory_space<vmem>>, vector<128x64xbf16>
    %cst_8 = arith.constant dense<0.000000e+00> : vector<16x64xf32>
    %10 = tpu.matmul %8, %9, %cst_8 {dimension_numbers = #tpu.dot_dimension_numbers<[1], [0], [0], [1], [0, 0, 1, 1], [], []>} : vector<16x128xbf16>, vector<128x64xbf16>, vector<16x64xf32> -> vector<16x64xf32>
    %c0_9 = arith.constant 0 : index
    %c0_10 = arith.constant 0 : index
    %11 = vector.load %arg5[%c0_9, %c0_10] : memref<1x64xf32, #tpu.memory_space<vmem>>, vector<1x64xf32>
    %12 = vector.broadcast %11 : vector<1x64xf32> to vector<16x64xf32>
    %13 = arith.addf %10, %12 : vector<16x64xf32>
    %cst_11 = arith.constant 0.000000e+00 : f32
    %14 = vector.broadcast %cst_11 : f32 to vector<16x64xf32>
    %15 = arith.maximumf %13, %14 : vector<16x64xf32>
    %16 = arith.truncf %15 : vector<16x64xf32> to vector<16x64xbf16>
    %c0_12 = arith.constant 0 : index
    %c0_13 = arith.constant 0 : index
    %17 = vector.load %arg6[%c0_12, %c0_13] : memref<64x128xbf16, #tpu.memory_space<vmem>>, vector<64x128xbf16>
    %cst_14 = arith.constant dense<0.000000e+00> : vector<16x128xf32>
    %18 = tpu.matmul %16, %17, %cst_14 {dimension_numbers = #tpu.dot_dimension_numbers<[1], [0], [0], [1], [0, 0, 1, 1], [], []>} : vector<16x64xbf16>, vector<64x128xbf16>, vector<16x128xf32> -> vector<16x128xf32>
    %c0_15 = arith.constant 0 : index
    %c0_16 = arith.constant 0 : index
    %19 = vector.load %arg7[%c0_15, %c0_16] : memref<1x128xf32, #tpu.memory_space<vmem>>, vector<1x128xf32>
    %20 = vector.broadcast %19 : vector<1x128xf32> to vector<16x128xf32>
    %21 = arith.addf %18, %20 : vector<16x128xf32>
    %22 = vector.extract_strided_slice %21 {offsets = [0, 0], sizes = [16, 2], strides = [1, 1]} : vector<16x128xf32> to vector<16x2xf32>
    %c0_17 = arith.constant 0 : index
    %c0_18 = arith.constant 0 : index
    %23 = vector.load %arg8[%c0_17, %c0_18] : memref<16x2xf32, #tpu.memory_space<vmem>>, vector<16x2xf32>
    tpu.vector_store %arg8[%c0_17, %c0_18], %22 {strides = array<i32>} : memref<16x2xf32, #tpu.memory_space<vmem>>, vector<16x2xf32>,
    return
  }
  func.func @transform_0(%arg0: i32) -> (i32, i32) {
    %c0_i32 = arith.constant 0 : i32
    %c0_i32_0 = arith.constant 0 : i32
    return %arg0, %c0_i32 : i32, i32
  }
  func.func @transform_1(%arg0: i32) -> (i32, i32) {
    %c0_i32 = arith.constant 0 : i32
    %c0_i32_0 = arith.constant 0 : i32
    %c0_i32_1 = arith.constant 0 : i32
    return %c0_i32, %c0_i32_0 : i32, i32
  }
  func.func @transform_2(%arg0: i32) -> (i32, i32) {
    %c0_i32 = arith.constant 0 : i32
    %c0_i32_0 = arith.constant 0 : i32
    %c0_i32_1 = arith.constant 0 : i32
    return %c0_i32, %c0_i32_0 : i32, i32
  }
  func.func @transform_3(%arg0: i32) -> (i32, i32) {
    %c0_i32 = arith.constant 0 : i32
    %c0_i32_0 = arith.constant 0 : i32
    %c0_i32_1 = arith.constant 0 : i32
    return %c0_i32, %c0_i32_0 : i32, i32
  }
  func.func @transform_4(%arg0: i32) -> (i32, i32) {
    %c0_i32 = arith.constant 0 : i32
    %c0_i32_0 = arith.constant 0 : i32
    %c0_i32_1 = arith.constant 0 : i32
    return %c0_i32, %c0_i32_0 : i32, i32
  }
  func.func @transform_5(%arg0: i32) -> (i32, i32) {
    %c0_i32 = arith.constant 0 : i32
    %c0_i32_0 = arith.constant 0 : i32
    %c0_i32_1 = arith.constant 0 : i32
    return %c0_i32, %c0_i32_0 : i32, i32
  }
  func.func @transform_6(%arg0: i32) -> (i32, i32) {
    %c0_i32 = arith.constant 0 : i32
    %c0_i32_0 = arith.constant 0 : i32
    %c0_i32_1 = arith.constant 0 : i32
    return %c0_i32, %c0_i32_0 : i32, i32
  }
  func.func @transform_7(%arg0: i32) -> (i32, i32) {
    %c0_i32 = arith.constant 0 : i32
    %c0_i32_0 = arith.constant 0 : i32
    return %arg0, %c0_i32 : i32, i32
  }
}

</mosaic_0001>

<llo_original>
// kernel: tpu_custom_call.1
$region0: #{tpu_custom_call.1}
  #allocation0 [shape = 'u32[]', space=smem, size = 0x4, offset = 0x4, fixed_abs, tag = 'smem constant byte address 0x4 - core index']
  #allocation1 [shape = 'u32[144,128]{1,0:T(1,128)}', space=vmem, size = 0x12000, scoped, tag = 'internal scratch']
  %s0 = inlined_call_operand.vmem [shape: bf16[16,32], index: 0, kind: input, shape index: {}]
  %s1 = inlined_call_operand.vmem [shape: bf16[32,128], index: 1, kind: input, shape index: {}]
  %s2 = inlined_call_operand.vmem [shape: f32[1,128], index: 2, kind: input, shape index: {}]
  %s3 = inlined_call_operand.vmem [shape: bf16[128,64], index: 3, kind: input, shape index: {}]
  %s4 = inlined_call_operand.vmem [shape: f32[1,64], index: 4, kind: input, shape index: {}]
  %s5 = inlined_call_operand.vmem [shape: bf16[64,128], index: 5, kind: input, shape index: {}]
  %s6 = inlined_call_operand.vmem [shape: f32[1,128], index: 6, kind: input, shape index: {}]
  %s7 = inlined_call_operand.vmem [shape: f32[16,2], index: 7, kind: output, shape index: {}]
  %s8 = sld [smem:[#allocation0]]
  $region38: #{tpu_custom_call.1} parent=0
    _
  %s10 = ssub.s32 1, %s8
  %s11 = scalar_select 0, %s10, %s8
  // Predicated region
  $region2: #{tpu_custom_call.1} parent=0 // pred_check
    _
  $region3: #{tpu_custom_call.1} parent=0 // pred_check_branch
    %13 = sbr.rel (0) target = $region5
  $region4: #{tpu_custom_call.1} parent=0 // pred_region
    _
  $region5: #{tpu_custom_call.1} parent=0 // pred_fallthru
    _
  // Predicated region
  $region6: #{tpu_custom_call.1} parent=0 // pred_check
    _
  $region7: #{tpu_custom_call.1} parent=0 // pred_check_branch
    %15 = sbr.rel (0) target = $region9
  $region8: #{tpu_custom_call.1} parent=0 // pred_region
    _
  $region9: #{tpu_custom_call.1} parent=0 // pred_fallthru
    _
  // Predicated region
  $region10: #{tpu_custom_call.1} parent=0 // pred_check
    _
  $region11: #{tpu_custom_call.1} parent=0 // pred_check_branch
    %17 = sbr.rel (0) target = $region13
  $region12: #{tpu_custom_call.1} parent=0 // pred_region
    _
  $region13: #{tpu_custom_call.1} parent=0 // pred_fallthru
    _
  // Predicated region
  $region14: #{tpu_custom_call.1} parent=0 // pred_check
    _
  $region15: #{tpu_custom_call.1} parent=0 // pred_check_branch
    %19 = sbr.rel (0) target = $region17
  $region16: #{tpu_custom_call.1} parent=0 // pred_region
    _
  $region17: #{tpu_custom_call.1} parent=0 // pred_fallthru
    _
  // Predicated region
  $region18: #{tpu_custom_call.1} parent=0 // pred_check
    _
  $region19: #{tpu_custom_call.1} parent=0 // pred_check_branch
    %21 = sbr.rel (0) target = $region21
  $region20: #{tpu_custom_call.1} parent=0 // pred_region
    _
  $region21: #{tpu_custom_call.1} parent=0 // pred_fallthru
    _
  // Predicated region
  $region22: #{tpu_custom_call.1} parent=0 // pred_check
    _
  $region23: #{tpu_custom_call.1} parent=0 // pred_check_branch
    %23 = sbr.rel (0) target = $region25
  $region24: #{tpu_custom_call.1} parent=0 // pred_region
    _
  $region25: #{tpu_custom_call.1} parent=0 // pred_fallthru
    _
  // Predicated region
  $region26: #{tpu_custom_call.1} parent=0 // pred_check
    _
  $region27: #{tpu_custom_call.1} parent=0 // pred_check_branch
    %25 = sbr.rel (0) target = $region29
  $region28: #{tpu_custom_call.1} parent=0 // pred_region
    _
  $region29: #{tpu_custom_call.1} parent=0 // pred_fallthru
    _
  %v27 = vld [vmem:[%s0] sm:$0xf]
  %v28 = vld [vmem:[%s0 + $0x4] sm:$0xf]
  %v29 = vld [vmem:[%s1] sm:$0xf]
  %v30 = vld [vmem:[%s1 + $0x4] sm:$0xf]
  %v31 = vld [vmem:[%s1 + $0x8] sm:$0xf]
  %v32 = vld [vmem:[%s1 + $0xc] sm:$0xf]
  %v33 = vld [vmem:[%s2] sm:$0x1]
  %v35 = vlaneseq
  %v36 = vshrl.u32 %v35, 7
  %v37 = vsub.s32 0, %v36
  %v38 = vrot.slane %v33, %v37
  %v42 = vunpack.c.l.b16 %v27
  %v43 = vunpack.c.l.b16 %v28
  %v44 = vpack.c.b16 %v43, %v42
  %v49 = vunpack.c.l.b16 %v29
  %v50 = vunpack.c.l.b16 %v30
  %v51 = vunpack.c.l.b16 %v31
  %v52 = vunpack.c.l.b16 %v32
  %v53 = vpack.c.b16 %v50, %v49
  %v54 = vpack.c.b16 %v52, %v51
  %vm57 = vcmask 261120
  %v59 = vsel %vm57, %v44, 0
  %61 = vmatprep.subr.bf16.mxu0 0
  %62 = vmatpush1.bf16.msra.mxu0 %v53
  %63 = vmatprep.subr.bf16.mxu0 0
  %64 = vmatpush1.bf16.msra.mxu0 %v54
  %65 = vmatprep.subr.bf16.mxu0 0
  %66 = vmatpush1.bf16.msra.mxu0 0
  %67 = vmatprep.subr.bf16.mxu0 0
  %68 = vmatpush1.bf16.msra.mxu0 0
  %69 = vmatprep.subr.bf16.mxu0 0
  %70 = vmatpush1.bf16.msra.mxu0 0
  %71 = vmatprep.subr.bf16.mxu0 0
  %72 = vmatpush1.bf16.msra.mxu0 0
  %73 = vmatprep.subr.bf16.mxu0 0
  %74 = vmatpush1.bf16.msra.mxu0 0
  %75 = vmatprep.subr.bf16.mxu0 0
  %76 = vmatpush1.bf16.msra.mxu0 0
  %77 = vmatprep.subr.bf16.mxu0 0
  %78 = vmatpush1.bf16.msra.mxu0 0
  %79 = vmatprep.subr.bf16.mxu0 0
  %80 = vmatpush1.bf16.msra.mxu0 0
  %81 = vmatprep.subr.bf16.mxu0 0
  %82 = vmatpush1.bf16.msra.mxu0 0
  %83 = vmatprep.subr.bf16.mxu0 0
  %84 = vmatpush1.bf16.msra.mxu0 0
  %85 = vmatprep.subr.bf16.mxu0 0
  %86 = vmatpush1.bf16.msra.mxu0 0
  %87 = vmatprep.subr.bf16.mxu0 0
  %88 = vmatpush1.bf16.msra.mxu0 0
  %89 = vmatprep.subr.bf16.mxu0 0
  %90 = vmatpush1.bf16.msra.mxu0 0
  %91 = vmatprep.subr.bf16.mxu0 0
  %92 = vmatpush1.bf16.msra.mxu0 0
  %93 = vmatprep.mubr.bf16.mxu0 0
  %94 = vmatmul.mubr.bf16.gmra.mrb[0].mxu0 %v59
  %v95 = vpop.f32.mrb[0].mxu0
  %v96 = vadd.f32 %v38, %v95
  %v97 = vpop.f32.mrb[0].mxu0
  %v98 = vpop.f32.mrb[0].mxu0
  %v99 = vadd.f32 %v38, %v98
  %v100 = vpop.f32.mrb[0].mxu0
  %101 = vdwg.mxu0
  %v102 = vmax.f32 %v96, 0.0
  %v103 = vmax.f32 %v99, 0.0
  %v104 = vpack.c.bf16 %v103, %v102
  %v105 = vld [vmem:[%s3] sm:$0xf]
  %v106 = vld [vmem:[%s3 + $0x4] sm:$0xf]
  %v107 = vld [vmem:[%s3 + $0x8] sm:$0xf]
  %v108 = vld [vmem:[%s3 + $0xc] sm:$0xf]
  %v109 = vld [vmem:[%s3 + $0x10] sm:$0xf]
  %v110 = vld [vmem:[%s3 + $0x14] sm:$0xf]
  %v111 = vld [vmem:[%s3 + $0x18] sm:$0xf]
  %v112 = vld [vmem:[%s3 + $0x1c] sm:$0xf]
  %v113 = vld [vmem:[%s3 + $0x20] sm:$0xf]
  %v114 = vld [vmem:[%s3 + $0x24] sm:$0xf]
  %v115 = vld [vmem:[%s3 + $0x28] sm:$0xf]
  %v116 = vld [vmem:[%s3 + $0x2c] sm:$0xf]
  %v117 = vld [vmem:[%s3 + $0x30] sm:$0xf]
  %v118 = vld [vmem:[%s3 + $0x34] sm:$0xf]
  %v119 = vld [vmem:[%s3 + $0x38] sm:$0xf]
  %v120 = vld [vmem:[%s3 + $0x3c] sm:$0xf]
  %v121 = vld [vmem:[%s4] sm:$0x1]
  %v123 = vlaneseq
  %v124 = vshrl.u32 %v123, 7
  %v125 = vsub.s32 0, %v124
  %v126 = vrot.slane %v121, %v125
  %v144 = vunpack.c.l.b16 %v105
  %v145 = vunpack.c.l.b16 %v106
  %v146 = vunpack.c.l.b16 %v107
  %v147 = vunpack.c.l.b16 %v108
  %v148 = vunpack.c.l.b16 %v109
  %v149 = vunpack.c.l.b16 %v110
  %v150 = vunpack.c.l.b16 %v111
  %v151 = vunpack.c.l.b16 %v112
  %v152 = vunpack.c.l.b16 %v113
  %v153 = vunpack.c.l.b16 %v114
  %v154 = vunpack.c.l.b16 %v115
  %v155 = vunpack.c.l.b16 %v116
  %v156 = vunpack.c.l.b16 %v117
  %v157 = vunpack.c.l.b16 %v118
  %v158 = vunpack.c.l.b16 %v119
  %v159 = vunpack.c.l.b16 %v120
  %v160 = vpack.c.b16 %v145, %v144
  %v161 = vpack.c.b16 %v147, %v146
  %v162 = vpack.c.b16 %v149, %v148
  %v163 = vpack.c.b16 %v151, %v150
  %v164 = vpack.c.b16 %v153, %v152
  %v165 = vpack.c.b16 %v155, %v154
  %v166 = vpack.c.b16 %v157, %v156
  %v167 = vpack.c.b16 %v159, %v158
  %176 = vmatprep.subr.bf16.mxu0 0
  %177 = vmatpush1.bf16.msra.mxu0 %v160
  %178 = vmatprep.subr.bf16.mxu0 0
  %179 = vmatpush1.bf16.msra.mxu0 %v161
  %180 = vmatprep.subr.bf16.mxu0 0
  %181 = vmatpush1.bf16.msra.mxu0 %v162
  %182 = vmatprep.subr.bf16.mxu0 0
  %183 = vmatpush1.bf16.msra.mxu0 %v163
  %184 = vmatprep.subr.bf16.mxu0 0
  %185 = vmatpush1.bf16.msra.mxu0 %v164
  %186 = vmatprep.subr.bf16.mxu0 0
  %187 = vmatpush1.bf16.msra.mxu0 %v165
  %188 = vmatprep.subr.bf16.mxu0 0
  %189 = vmatpush1.bf16.msra.mxu0 %v166
  %190 = vmatprep.subr.bf16.mxu0 0
  %191 = vmatpush1.bf16.msra.mxu0 %v167
  %192 = vmatprep.subr.bf16.mxu0 0
  %193 = vmatpush1.bf16.msra.mxu0 0
  %194 = vmatprep.subr.bf16.mxu0 0
  %195 = vmatpush1.bf16.msra.mxu0 0
  %196 = vmatprep.subr.bf16.mxu0 0
  %197 = vmatpush1.bf16.msra.mxu0 0
  %198 = vmatprep.subr.bf16.mxu0 0
  %199 = vmatpush1.bf16.msra.mxu0 0
  %200 = vmatprep.subr.bf16.mxu0 0
  %201 = vmatpush1.bf16.msra.mxu0 0
  %202 = vmatprep.subr.bf16.mxu0 0
  %203 = vmatpush1.bf16.msra.mxu0 0
  %204 = vmatprep.subr.bf16.mxu0 0
  %205 = vmatpush1.bf16.msra.mxu0 0
  %206 = vmatprep.subr.bf16.mxu0 0
  %207 = vmatpush1.bf16.msra.mxu0 0
  %208 = vmatprep.mubr.bf16.mxu0 0
  %209 = vmatmul.mubr.bf16.gmra.mrb[0].mxu0 %v104
  %v210 = vpop.f32.mrb[0].mxu0
  %v211 = vadd.f32 %v126, %v210
  %v212 = vpop.f32.mrb[0].mxu0
  %v213 = vpop.f32.mrb[0].mxu0
  %v214 = vadd.f32 %v126, %v213
  %v215 = vpop.f32.mrb[0].mxu0
  %216 = vdwg.mxu0
  %v217 = vmax.f32 %v211, 0.0
  %v218 = vmax.f32 %v214, 0.0
  %v219 = vpack.c.bf16 %v218, %v217
  %v220 = vld [vmem:[%s5] sm:$0xf]
  %v221 = vld [vmem:[%s5 + $0x4] sm:$0xf]
  %v222 = vld [vmem:[%s5 + $0x8] sm:$0xf]
  %v223 = vld [vmem:[%s5 + $0xc] sm:$0xf]
  %v224 = vld [vmem:[%s5 + $0x10] sm:$0xf]
  %v225 = vld [vmem:[%s5 + $0x14] sm:$0xf]
  %v226 = vld [vmem:[%s5 + $0x18] sm:$0xf]
  %v227 = vld [vmem:[%s5 + $0x1c] sm:$0xf]
  %v228 = vld [vmem:[%s6] sm:$0x1]
  %v230 = vlaneseq
  %v231 = vshrl.u32 %v230, 7
  %v232 = vsub.s32 0, %v231
  %v233 = vrot.slane %v228, %v232
  %v243 = vunpack.c.l.b16 %v220
  %v244 = vunpack.c.l.b16 %v221
  %v245 = vunpack.c.l.b16 %v222
  %v246 = vunpack.c.l.b16 %v223
  %v247 = vunpack.c.l.b16 %v224
  %v248 = vunpack.c.l.b16 %v225
  %v249 = vunpack.c.l.b16 %v226
  %v250 = vunpack.c.l.b16 %v227
  %v251 = vpack.c.b16 %v244, %v243
  %v252 = vpack.c.b16 %v246, %v245
  %v253 = vpack.c.b16 %v248, %v247
  %v254 = vpack.c.b16 %v250, %v249
  %vm259 = vcmask 523264
  %v261 = vsel %vm259, %v219, 0
  %263 = vmatprep.subr.bf16.mxu0 0
  %264 = vmatpush1.bf16.msra.mxu0 %v251
  %265 = vmatprep.subr.bf16.mxu0 0
  %266 = vmatpush1.bf16.msra.mxu0 %v252
  %267 = vmatprep.subr.bf16.mxu0 0
  %268 = vmatpush1.bf16.msra.mxu0 %v253
  %269 = vmatprep.subr.bf16.mxu0 0
  %270 = vmatpush1.bf16.msra.mxu0 %v254
  %271 = vmatprep.subr.bf16.mxu0 0
  %272 = vmatpush1.bf16.msra.mxu0 0
  %273 = vmatprep.subr.bf16.mxu0 0
  %274 = vmatpush1.bf16.msra.mxu0 0
  %275 = vmatprep.subr.bf16.mxu0 0
  %276 = vmatpush1.bf16.msra.mxu0 0
  %277 = vmatprep.subr.bf16.mxu0 0
  %278 = vmatpush1.bf16.msra.mxu0 0
  %279 = vmatprep.subr.bf16.mxu0 0
  %280 = vmatpush1.bf16.msra.mxu0 0
  %281 = vmatprep.subr.bf16.mxu0 0
  %282 = vmatpush1.bf16.msra.mxu0 0
  %283 = vmatprep.subr.bf16.mxu0 0
  %284 = vmatpush1.bf16.msra.mxu0 0
  %285 = vmatprep.subr.bf16.mxu0 0
  %286 = vmatpush1.bf16.msra.mxu0 0
  %287 = vmatprep.subr.bf16.mxu0 0
  %288 = vmatpush1.bf16.msra.mxu0 0
  %289 = vmatprep.subr.bf16.mxu0 0
  %290 = vmatpush1.bf16.msra.mxu0 0
  %291 = vmatprep.subr.bf16.mxu0 0
  %292 = vmatpush1.bf16.msra.mxu0 0
  %293 = vmatprep.subr.bf16.mxu0 0
  %294 = vmatpush1.bf16.msra.mxu0 0
  %295 = vmatprep.mubr.bf16.mxu0 0
  %296 = vmatmul.mubr.bf16.gmra.mrb[0].mxu0 %v261
  %v297 = vpop.f32.mrb[0].mxu0
  %v298 = vadd.f32 %v233, %v297
  %v299 = vpop.f32.mrb[0].mxu0
  %v300 = vpop.f32.mrb[0].mxu0
  %v301 = vadd.f32 %v233, %v300
  %v302 = vpop.f32.mrb[0].mxu0
  %303 = vdwg.mxu0
  %vm304 = vcmask 15360
  %305 = vst.msk [vmem:[%s7] sm:$0xff] %vm304, %v298
  %306 = vst.msk [vmem:[%s7 + $0x8] sm:$0xff] %vm304, %v301
  // Predicated region
  $region30: #{tpu_custom_call.1} parent=0 // pred_check
    _
  $region31: #{tpu_custom_call.1} parent=0 // pred_check_branch
    %308 = sbr.rel (0) target = $region33
  $region32: #{tpu_custom_call.1} parent=0 // pred_region
    _
  $region33: #{tpu_custom_call.1} parent=0 // pred_fallthru
    _
  // Predicated region
  $region34: #{tpu_custom_call.1} parent=0 // pred_check
    _
  $region35: #{tpu_custom_call.1} parent=0 // pred_check_branch
    %310 = sbr.rel (0) target = $region37
  $region36: #{tpu_custom_call.1} parent=0 // pred_region
    _
  $region37: #{tpu_custom_call.1} parent=0 // pred_fallthru
    _

</llo_original>
